<compile_context>
chip_gen: v7x
topology: tpu7x:2x2x1
jax: 0.10.0
libtpu: 0.0.40
codegen_flags: <defaults>
</compile_context>

<pallas_src>
import jax
import jax.numpy as jnp
from jax.experimental import pallas as pl
from jax.experimental.pallas import tpu as pltpu


# ----------------------------- kernel ---------------------------------------


def _norm_linear_kernel(x_ref, mu_ref, isig_ref, w_ref, b_ref, o_ref):
    """Fused normalize + linear head.

    x_ref:    (TN, F)    float32 row tile of the flattened NCHW input
    mu_ref:   (1, F)     float32 per-feature mean (channel value repeated over H*W)
    isig_ref: (1, F)     float32 per-feature 1/sigma
    w_ref:    (F, KPAD)  bfloat16 weights (K zero-padded to 128)
    b_ref:    (1, KPAD)  float32 bias
    o_ref:    (TN, KPAD) float32 logits tile
    """
    # Normalization on the VPU in f32 (multiply by precomputed reciprocal).
    x_norm = (x_ref[...] - mu_ref[...]) * isig_ref[...]
    # bf16 MXU matmul with f32 accumulation.
    o_ref[...] = (
        jnp.dot(
            x_norm.astype(jnp.bfloat16),
            w_ref[...],
            preferred_element_type=jnp.float32,
        )
        + b_ref[...]
    )


# ----------------------------- wrapper ---------------------------------------


KPAD = 128  # lane-dense output width / MXU-friendly class dim


def auto_wrapper_forward(x, mu, sigma, w, b, *, tn=128):
    """Pallas implementation of AutoWrapper.forward: normalize then wrapped model.

    x:     (N, C, H, W) float32
    mu:    (C,)         float32 per-channel mean
    sigma: (C,)         float32 per-channel std
    w:     (C*H*W, K)   float32 stand-in linear-head weights
    b:     (K,)         float32 stand-in linear-head bias
    returns (N, K) float32 logits
    """
    N, C, H, W = x.shape
    HW = H * W
    F = C * HW
    K = w.shape[1]

    # ---- trace-time preparation (plain JAX glue, tiny) ----
    inv_sigma = (1.0 / sigma).astype(jnp.float32)
    mu_row = jnp.broadcast_to(mu.reshape(C, 1), (C, HW)).reshape(1, F).astype(jnp.float32)
    isig_row = jnp.broadcast_to(inv_sigma.reshape(C, 1), (C, HW)).reshape(1, F)

    # Zero-pad class dim to 128 for lane-dense stores; cast weights to bf16 once.
    w_pad = jnp.zeros((F, KPAD), jnp.float32).at[:, :K].set(w).astype(jnp.bfloat16)
    b_pad = jnp.zeros((1, KPAD), jnp.float32).at[0, :K].set(b)

    # Flatten NCHW -> (N, F) and pad the batch to a multiple of the row tile.
    x2d = x.reshape(N, F).astype(jnp.float32)
    tn = max(8, min(tn, 128))
    n_pad = pl.cdiv(N, tn) * tn
    if n_pad != N:
        x2d = jnp.pad(x2d, ((0, n_pad - N), (0, 0)))

    grid = (n_pad // tn,)

    out_pad = pl.pallas_call(
        _norm_linear_kernel,
        out_shape=jax.ShapeDtypeStruct((n_pad, KPAD), jnp.float32),
        grid=grid,
        in_specs=[
            pl.BlockSpec((tn, F), lambda i: (i, 0)),     # x row tile (pipelined)
            pl.BlockSpec((1, F), lambda i: (0, 0)),      # mu row (resident)
            pl.BlockSpec((1, F), lambda i: (0, 0)),      # 1/sigma row (resident)
            pl.BlockSpec((F, KPAD), lambda i: (0, 0)),   # weights (resident, bf16)
            pl.BlockSpec((1, KPAD), lambda i: (0, 0)),   # bias (resident)
        ],
        out_specs=pl.BlockSpec((tn, KPAD), lambda i: (i, 0)),
        compiler_params=pltpu.CompilerParams(
            dimension_semantics=("parallel",),           # megacore-shardable on v7x
            vmem_limit_bytes=32 * 1024 * 1024,
        ),
    )(x2d, mu_row, isig_row, w_pad, b_pad)

    return out_pad[:N, :K]


# ------------------------------- main ----------------------------------------


if __name__ == "__main__":
    key = jax.random.PRNGKey(0)
    kx, kw, kb = jax.random.split(key, 3)

    # Small shapes consistent with the module: C must be 3 (mu/sigma are 3-channel).
    N, C, H, W = 32, 3, 16, 16
    NUM_CLASSES = 10
    F = C * H * W

    x = jax.random.uniform(kx, (N, C, H, W), dtype=jnp.float32)

    # CIFAR-10 normalization constants from the reference module.
    mu = jnp.array([0.4914, 0.4822, 0.4465], dtype=jnp.float32)
    sigma = jnp.array([0.2471, 0.2435, 0.2616], dtype=jnp.float32)

    # Deterministic synthetic weights for the stand-in linear head.
    w = jax.random.normal(kw, (F, NUM_CLASSES), dtype=jnp.float32) * 0.02
    b = jax.random.normal(kb, (NUM_CLASSES,), dtype=jnp.float32) * 0.02

    # tn=8 so the small example actually exercises multiple pipelined grid steps.
    out = auto_wrapper_forward(x, mu, sigma, w, b, tn=8)
    out = jax.block_until_ready(out)

    # Pure-JAX f32 reference (tolerance widened for the bf16 MXU operands).
    x_norm_ref = (x - mu.reshape(1, C, 1, 1)) / sigma.reshape(1, C, 1, 1)
    ref = (
        jnp.dot(x_norm_ref.reshape(N, F), w, precision=jax.lax.Precision.HIGHEST)
        + b
    )

    assert out.shape == (N, NUM_CLASSES)
    assert jnp.allclose(out, ref, atol=5e-2, rtol=5e-2), "mismatch vs reference"

    print("KERNEL_OK")
</pallas_src>

<mosaic_0001>
module attributes {stable_mosaic.version = 11 : i64} {
  func.func @_norm_linear_kernel(%arg0: i32, %arg1: memref<8x768xf32, #tpu.memory_space<vmem>>, %arg2: memref<1x768xf32, #tpu.memory_space<vmem>>, %arg3: memref<1x768xf32, #tpu.memory_space<vmem>>, %arg4: memref<768x128xbf16, #tpu.memory_space<vmem>>, %arg5: memref<1x128xf32, #tpu.memory_space<vmem>>, %arg6: memref<8x128xf32, #tpu.memory_space<vmem>>) attributes {dimension_semantics = [#tpu.dimension_semantics<parallel>], iteration_bounds = array<i64: 4>, scalar_prefetch = 0 : i64, scratch_operands = 0 : i64, tpu.core_type = #tpu.core_type<tc>, window_params = [{transform_indices = @transform_0, window_bounds = array<i64: 8, 768>}, {pipeline_mode = #tpu.pipeline_mode<synchronous>, transform_indices = @transform_1, window_bounds = array<i64: 1, 768>}, {pipeline_mode = #tpu.pipeline_mode<synchronous>, transform_indices = @transform_2, window_bounds = array<i64: 1, 768>}, {pipeline_mode = #tpu.pipeline_mode<synchronous>, transform_indices = @transform_3, window_bounds = array<i64: 768, 128>}, {pipeline_mode = #tpu.pipeline_mode<synchronous>, transform_indices = @transform_4, window_bounds = array<i64: 1, 128>}, {transform_indices = @transform_5, window_bounds = array<i64: 8, 128>}]} {
    %c0 = arith.constant 0 : index
    %c0_0 = arith.constant 0 : index
    %0 = vector.load %arg1[%c0, %c0_0] : memref<8x768xf32, #tpu.memory_space<vmem>>, vector<8x768xf32>
    %c0_1 = arith.constant 0 : index
    %c0_2 = arith.constant 0 : index
    %1 = vector.load %arg2[%c0_1, %c0_2] : memref<1x768xf32, #tpu.memory_space<vmem>>, vector<1x768xf32>
    %2 = vector.broadcast %1 : vector<1x768xf32> to vector<8x768xf32>
    %3 = arith.subf %0, %2 : vector<8x768xf32>
    %c0_3 = arith.constant 0 : index
    %c0_4 = arith.constant 0 : index
    %4 = vector.load %arg3[%c0_3, %c0_4] : memref<1x768xf32, #tpu.memory_space<vmem>>, vector<1x768xf32>
    %5 = vector.broadcast %4 : vector<1x768xf32> to vector<8x768xf32>
    %6 = arith.mulf %3, %5 : vector<8x768xf32>
    %7 = arith.truncf %6 : vector<8x768xf32> to vector<8x768xbf16>
    %c0_5 = arith.constant 0 : index
    %c0_6 = arith.constant 0 : index
    %8 = vector.load %arg4[%c0_5, %c0_6] : memref<768x128xbf16, #tpu.memory_space<vmem>>, vector<768x128xbf16>
    %cst = arith.constant dense<0.000000e+00> : vector<8x128xf32>
    %9 = tpu.matmul %7, %8, %cst {dimension_numbers = #tpu.dot_dimension_numbers<[1], [0], [0], [1], [0, 0, 1, 1], [], []>} : vector<8x768xbf16>, vector<768x128xbf16>, vector<8x128xf32> -> vector<8x128xf32>
    %c0_7 = arith.constant 0 : index
    %c0_8 = arith.constant 0 : index
    %10 = vector.load %arg5[%c0_7, %c0_8] : memref<1x128xf32, #tpu.memory_space<vmem>>, vector<1x128xf32>
    %11 = vector.broadcast %10 : vector<1x128xf32> to vector<8x128xf32>
    %12 = arith.addf %9, %11 : vector<8x128xf32>
    %c0_9 = arith.constant 0 : index
    %c0_10 = arith.constant 0 : index
    %13 = vector.load %arg6[%c0_9, %c0_10] : memref<8x128xf32, #tpu.memory_space<vmem>>, vector<8x128xf32>
    tpu.vector_store %arg6[%c0_9, %c0_10], %12 {strides = array<i32>} : memref<8x128xf32, #tpu.memory_space<vmem>>, vector<8x128xf32>,
    return
  }
  func.func @transform_0(%arg0: i32) -> (i32, i32) {
    %c0_i32 = arith.constant 0 : i32
    %c0_i32_0 = arith.constant 0 : i32
    return %arg0, %c0_i32 : i32, i32
  }
  func.func @transform_1(%arg0: i32) -> (i32, i32) {
    %c0_i32 = arith.constant 0 : i32
    %c0_i32_0 = arith.constant 0 : i32
    %c0_i32_1 = arith.constant 0 : i32
    return %c0_i32, %c0_i32_0 : i32, i32
  }
  func.func @transform_2(%arg0: i32) -> (i32, i32) {
    %c0_i32 = arith.constant 0 : i32
    %c0_i32_0 = arith.constant 0 : i32
    %c0_i32_1 = arith.constant 0 : i32
    return %c0_i32, %c0_i32_0 : i32, i32
  }
  func.func @transform_3(%arg0: i32) -> (i32, i32) {
    %c0_i32 = arith.constant 0 : i32
    %c0_i32_0 = arith.constant 0 : i32
    %c0_i32_1 = arith.constant 0 : i32
    return %c0_i32, %c0_i32_0 : i32, i32
  }
  func.func @transform_4(%arg0: i32) -> (i32, i32) {
    %c0_i32 = arith.constant 0 : i32
    %c0_i32_0 = arith.constant 0 : i32
    %c0_i32_1 = arith.constant 0 : i32
    return %c0_i32, %c0_i32_0 : i32, i32
  }
  func.func @transform_5(%arg0: i32) -> (i32, i32) {
    %c0_i32 = arith.constant 0 : i32
    %c0_i32_0 = arith.constant 0 : i32
    return %arg0, %c0_i32 : i32, i32
  }
}

</mosaic_0001>

<llo_original>
// kernel: tpu_custom_call.1
$region0: #{tpu_custom_call.1}
  #allocation0 [shape = 'u32[]', space=smem, size = 0x4, offset = 0x4, fixed_abs, tag = 'smem constant byte address 0x4 - core index']
  #allocation1 [shape = 'u32[144,128]{1,0:T(1,128)}', space=vmem, size = 0x12000, scoped, tag = 'internal scratch']
  %s0 = inlined_call_operand.hbm [shape: f32[32,768], index: 0, kind: input, shape index: {}]
  %s1 = inlined_call_operand.hbm [shape: f32[1,768], index: 1, kind: input, shape index: {}]
  %s2 = inlined_call_operand.vmem [shape: f32[1,768], index: 2, kind: input, shape index: {}]
  %s3 = inlined_call_operand.hbm [shape: bf16[768,128], index: 3, kind: input, shape index: {}]
  %s4 = inlined_call_operand.vmem [shape: f32[1,128], index: 4, kind: input, shape index: {}]
  %s5 = inlined_call_operand.hbm [shape: f32[32,128], index: 5, kind: output, shape index: {}]
  %s6 = sld [smem:[#allocation0]]
  $region65: #{tpu_custom_call.1} parent=0
    _
  %s8 = ssub.s32 1, %s6
  %s9 = scalar_select 0, %s8, %s6
  $region1: #{tpu_custom_call.1} parent=0
    #allocation2 [shape = 'u8[49152]{0}', space=vmem, size = 0xc000, scoped, tag = 'input window, operand 0']
    #allocation3 [shape = 's32[2]{0}', space=sflag, size = 0x8, scoped, tag = 'scoped memory for tpu_custom_call.1']
    #allocation4 [shape = 's32[2]{0}', space=sflag, size = 0x8, scoped, tag = 'scoped memory for tpu_custom_call.1']
    #allocation5 [shape = 'u8[3072]{0}', space=vmem, size = 0xc00, scoped, tag = 'input window, operand 1, single buffered']
    #allocation6 [shape = 's32[1]{0}', space=sflag, size = 0x4, scoped, tag = 'scoped memory for tpu_custom_call.1']
    #allocation7 [shape = 'u8[196608]{0}', space=vmem, size = 0x30000, scoped, tag = 'input window, operand 3, single buffered']
    #allocation8 [shape = 'u8[8192]{0}', space=vmem, size = 0x2000, scoped, tag = 'output window, operand 0']
    %10 = vsyncpa [#allocation3], 0
    %s11 = scalar_lea.sflag [#allocation3], 1
    %12 = vsyncpa %s11, 0
    %13 = vsyncpa [#allocation6], 0
    %14 = vsyncpa [#allocation4], 0
    %s15 = scalar_lea.sflag [#allocation4], 1
    %16 = vsyncpa %s15, 0
    loop: start=0, step=1, limit=6
    $region2: #{tpu_custom_call.1} parent=1 // loop_pre_header
      _
    $region3: #{tpu_custom_call.1} parent=1 // loop_header
      %s18 = sphi 0, %s22
      %p19 = scmp.ge.s32.totalorder %s18, 6
      %s28 = sphi 0, %s30
      %s31 = sphi 0, %s28
      %s32 = sphi 0, %s31
      %s48 = sphi 0, %s32
      %s52 = sphi 0, %s52
      %s54 = sphi 0, %s52
      %s55 = sphi 0, %s54
      %s69 = sphi 0, %s55
      %s73 = sphi 0, %s73
      %s75 = sphi 0, %s73
      %s76 = sphi 0, %s75
      %s90 = sphi 0, %s76
      %s94 = sphi 0, %s94
      %s96 = sphi 0, %s94
      %s97 = sphi 0, %s96
      %s111 = sphi 0, %s97
      %s115 = sphi 0, %s115
      %s117 = sphi 0, %s115
      %s118 = sphi 0, %s117
      %s132 = sphi 0, %s118
      %s138 = sphi 0, %s140
      %s141 = sphi 0, %s138
      %s142 = sphi 0, %s141
      %s158 = sphi 0, %s142
    $region4: #{tpu_custom_call.1} parent=1 // loop_header_branch
      %21 = sbr.rel (%p19) target = $region8
    $region5: #{tpu_custom_call.1} parent=1 // loop_body
      %s23 = ssub.s32 %s18, 1
      %s24 = ssub.s32 %s18, 2
      %s25 = sadd.s32 %s18, 1
      %s26 = ssub.s32 %s18, %s25
      %p27 = scmp.eq.s32.totalorder %s26, 0
      %s29 = sadd.s32 %s28, 1
      %s30 = scalar_select %p27, %s28, %s29
      %p33 = pneg %p27
      %p34 = scmp.eq.s32.totalorder %s18, 3
      %p35 = por %p33, %p34
      %p36 = scmp.ne.s32.totalorder %s28, %s31
      %p37 = scmp.eq.s32.totalorder %s18, 0
      %p38 = por %p36, %p37
      %p39 = scmp.ne.s32.totalorder %s28, %s31
      %p40 = scmp.eq.s32.totalorder %s23, 3
      %p41 = por %p39, %p40
      %p42 = scmp.ne.s32.totalorder %s31, %s32
      %p43 = scmp.eq.s32.totalorder %s23, 0
      %p44 = por %p42, %p43
      %p45 = scmp.ne.s32.totalorder %s31, %s32
      %p46 = scmp.eq.s32.totalorder %s24, 3
      %p47 = por %p45, %p46
      %p49 = scmp.ne.s32.totalorder %s32, %s48
      %p50 = scmp.eq.s32.totalorder %s24, 0
      %p51 = por %p49, %p50
      %s53 = sadd.s32 %s52, 1
      %p56 = scmp.eq.s32.totalorder %s18, 3
      %p57 = scmp.ne.s32.totalorder %s52, %s54
      %p58 = scmp.eq.s32.totalorder %s18, 0
      %p59 = por %p57, %p58
      %p60 = scmp.ne.s32.totalorder %s52, %s54
      %p61 = scmp.eq.s32.totalorder %s23, 3
      %p62 = por %p60, %p61
      %p63 = scmp.ne.s32.totalorder %s54, %s55
      %p64 = scmp.eq.s32.totalorder %s23, 0
      %p65 = por %p63, %p64
      %p66 = scmp.ne.s32.totalorder %s54, %s55
      %p67 = scmp.eq.s32.totalorder %s24, 3
      %p68 = por %p66, %p67
      %p70 = scmp.ne.s32.totalorder %s55, %s69
      %p71 = scmp.eq.s32.totalorder %s24, 0
      %p72 = por %p70, %p71
      %s74 = sadd.s32 %s73, 1
      %p77 = scmp.eq.s32.totalorder %s18, 3
      %p78 = scmp.ne.s32.totalorder %s73, %s75
      %p79 = scmp.eq.s32.totalorder %s18, 0
      %p80 = por %p78, %p79
      %p81 = scmp.ne.s32.totalorder %s73, %s75
      %p82 = scmp.eq.s32.totalorder %s23, 3
      %p83 = por %p81, %p82
      %p84 = scmp.ne.s32.totalorder %s75, %s76
      %p85 = scmp.eq.s32.totalorder %s23, 0
      %p86 = por %p84, %p85
      %p87 = scmp.ne.s32.totalorder %s75, %s76
      %p88 = scmp.eq.s32.totalorder %s24, 3
      %p89 = por %p87, %p88
      %p91 = scmp.ne.s32.totalorder %s76, %s90
      %p92 = scmp.eq.s32.totalorder %s24, 0
      %p93 = por %p91, %p92
      %s95 = sadd.s32 %s94, 1
      %p98 = scmp.eq.s32.totalorder %s18, 3
      %p99 = scmp.ne.s32.totalorder %s94, %s96
      %p100 = scmp.eq.s32.totalorder %s18, 0
      %p101 = por %p99, %p100
      %p102 = scmp.ne.s32.totalorder %s94, %s96
      %p103 = scmp.eq.s32.totalorder %s23, 3
      %p104 = por %p102, %p103
      %p105 = scmp.ne.s32.totalorder %s96, %s97
      %p106 = scmp.eq.s32.totalorder %s23, 0
      %p107 = por %p105, %p106
      %p108 = scmp.ne.s32.totalorder %s96, %s97
      %p109 = scmp.eq.s32.totalorder %s24, 3
      %p110 = por %p108, %p109
      %p112 = scmp.ne.s32.totalorder %s97, %s111
      %p113 = scmp.eq.s32.totalorder %s24, 0
      %p114 = por %p112, %p113
      %s116 = sadd.s32 %s115, 1
      %p119 = scmp.eq.s32.totalorder %s18, 3
      %p120 = scmp.ne.s32.totalorder %s115, %s117
      %p121 = scmp.eq.s32.totalorder %s18, 0
      %p122 = por %p120, %p121
      %p123 = scmp.ne.s32.totalorder %s115, %s117
      %p124 = scmp.eq.s32.totalorder %s23, 3
      %p125 = por %p123, %p124
      %p126 = scmp.ne.s32.totalorder %s117, %s118
      %p127 = scmp.eq.s32.totalorder %s23, 0
      %p128 = por %p126, %p127
      %p129 = scmp.ne.s32.totalorder %s117, %s118
      %p130 = scmp.eq.s32.totalorder %s24, 3
      %p131 = por %p129, %p130
      %p133 = scmp.ne.s32.totalorder %s118, %s132
      %p134 = scmp.eq.s32.totalorder %s24, 0
      %p135 = por %p133, %p134
      %s136 = ssub.s32 %s18, %s25
      %p137 = scmp.eq.s32.totalorder %s136, 0
      %s139 = sadd.s32 %s138, 1
      %s140 = scalar_select %p137, %s138, %s139
      %p143 = pneg %p137
      %p144 = scmp.eq.s32.totalorder %s18, 3
      %p145 = por %p143, %p144
      %p146 = scmp.ne.s32.totalorder %s138, %s141
      %p147 = scmp.eq.s32.totalorder %s18, 0
      %p148 = por %p146, %p147
      %p149 = scmp.ne.s32.totalorder %s138, %s141
      %p150 = scmp.eq.s32.totalorder %s23, 3
      %p151 = por %p149, %p150
      %p152 = scmp.ne.s32.totalorder %s141, %s142
      %p153 = scmp.eq.s32.totalorder %s23, 0
      %p154 = por %p152, %p153
      %p155 = scmp.ne.s32.totalorder %s141, %s142
      %p156 = scmp.eq.s32.totalorder %s24, 3
      %p157 = por %p155, %p156
      %p159 = scmp.ne.s32.totalorder %s142, %s158
      %p160 = scmp.eq.s32.totalorder %s24, 0
      %p161 = por %p159, %p160
      %p162 = scmp.le.s32.totalorder 1, %s18
      %p163 = scmp.lt.s32.totalorder %s18, 5
      %p164 = pnand %p162, %p163
      %p165 = pneg %p164
      // Predicated region
      $region9: #{tpu_custom_call.1} parent=5 // pred_check
        _
      $region10: #{tpu_custom_call.1} parent=5 // pred_check_branch
        %167 = sbr.rel (%p164) target = $region12
      $region11: #{tpu_custom_call.1} parent=5 // pred_region
        %s168 = ssub.s32 %s18, 1
        // Predicated region
        $region13: #{tpu_custom_call.1} parent=11 // pred_check
          %p169 = pneg %p65
        $region14: #{tpu_custom_call.1} parent=11 // pred_check_branch
          %171 = sbr.rel (%p169) target = $region16
        $region15: #{tpu_custom_call.1} parent=11 // pred_region
          %s173 = ssub.s32 96, 96
          %174 = vsyncadd [#allocation6], %s173
          %s176 = sshll.u32 [#allocation5], 4
          %s177 = int_to_ptr.vmem [resolvable:$true] %s176
          %179 = dma.hbm_to_vmem [thread:$0]  %s1, 96, %s177, [#allocation6]
        $region16: #{tpu_custom_call.1} parent=11 // pred_fallthru
          _
        // Predicated region
        $region17: #{tpu_custom_call.1} parent=11 // pred_check
          %p180 = pneg %p86
        $region18: #{tpu_custom_call.1} parent=11 // pred_check_branch
          %182 = sbr.rel (%p180) target = $region20
        $region19: #{tpu_custom_call.1} parent=11 // pred_region
          _
        $region20: #{tpu_custom_call.1} parent=11 // pred_fallthru
          _
        // Predicated region
        $region21: #{tpu_custom_call.1} parent=11 // pred_check
          %p183 = pneg %p107
        $region22: #{tpu_custom_call.1} parent=11 // pred_check_branch
          %185 = sbr.rel (%p183) target = $region24
        $region23: #{tpu_custom_call.1} parent=11 // pred_region
          %s187 = ssub.s32 6144, 6144
          %188 = vsyncadd [#allocation6], %s187
          %s189 = sshll.u32 [#allocation7], 4
          %s190 = int_to_ptr.vmem [resolvable:$true] %s189
          %195 = dma.hbm_to_vmem [thread:$0]  %s3, 6144, %s190, [#allocation6], 64, 64, 4
        $region24: #{tpu_custom_call.1} parent=11 // pred_fallthru
          _
        // Predicated region
        $region25: #{tpu_custom_call.1} parent=11 // pred_check
          %p196 = pneg %p128
        $region26: #{tpu_custom_call.1} parent=11 // pred_check_branch
          %198 = sbr.rel (%p196) target = $region28
        $region27: #{tpu_custom_call.1} parent=11 // pred_region
          _
        $region28: #{tpu_custom_call.1} parent=11 // pred_fallthru
          _
      $region12: #{tpu_custom_call.1} parent=5 // pred_fallthru
        _
      %p199 = scmp.lt.s32.totalorder %s18, 4
      // Predicated region
      $region29: #{tpu_custom_call.1} parent=5 // pred_check
        %p200 = pneg %p199
      $region30: #{tpu_custom_call.1} parent=5 // pred_check_branch
        %202 = sbr.rel (%p200) target = $region32
      $region31: #{tpu_custom_call.1} parent=5 // pred_region
        // Predicated region
        $region33: #{tpu_custom_call.1} parent=31 // pred_check
          %p203 = pneg %p38
        $region34: #{tpu_custom_call.1} parent=31 // pred_check_branch
          %205 = sbr.rel (%p203) target = $region36
        $region35: #{tpu_custom_call.1} parent=31 // pred_region
          %s206 = sand.u32 %s28, 1
          %s207 = scalar_lea.sflag [#allocation3], %s206
          %s208 = sand.u32 %s28, 1
          %s209 = smul.addr %s208, 48
          %s210 = scalar_lea.vmem [#allocation2], %s209
          %s212 = ssub.s32 768, 768
          %213 = vsyncadd %s207, %s212
          %s214 = smul.addr %s18, 6
          %s215 = smul.addr %s214, 128
          %s216 = scalar_lea.hbm %s0, %s215
          %s218 = sshll.u32 %s210, 4
          %s219 = int_to_ptr.vmem [resolvable:$true] %s218
          %221 = dma.hbm_to_vmem [thread:$0]  %s216, 768, %s219, %s207
        $region36: #{tpu_custom_call.1} parent=31 // pred_fallthru
          _
      $region32: #{tpu_custom_call.1} parent=5 // pred_fallthru
        _
      %p222 = scmp.le.s32.totalorder 1, %s18
      %p223 = scmp.lt.s32.totalorder %s18, 5
      %p224 = pnand %p222, %p223
      %p225 = pneg %p224
      // Predicated region
      $region37: #{tpu_custom_call.1} parent=5 // pred_check
        _
      $region38: #{tpu_custom_call.1} parent=5 // pred_check_branch
        %227 = sbr.rel (%p224) target = $region40
      $region39: #{tpu_custom_call.1} parent=5 // pred_region
        %s228 = ssub.s32 %s18, 1
        %s229 = sand.u32 %s31, 1
        %s230 = scalar_lea.sflag [#allocation3], %s229
        %s231 = sand.u32 %s31, 1
        %s232 = smul.addr %s231, 48
        %s233 = scalar_lea.vmem [#allocation2], %s232
        // Predicated region
        $region41: #{tpu_custom_call.1} parent=39 // pred_check
          %p234 = pneg %p44
        $region42: #{tpu_custom_call.1} parent=39 // pred_check_branch
          %236 = sbr.rel (%p234) target = $region44
        $region43: #{tpu_custom_call.1} parent=39 // pred_region
          %237 = dma.done %s230, 768
        $region44: #{tpu_custom_call.1} parent=39 // pred_fallthru
          _
        // Predicated region
        $region45: #{tpu_custom_call.1} parent=39 // pred_check
          %p238 = pneg %p65
        $region46: #{tpu_custom_call.1} parent=39 // pred_check_branch
          %240 = sbr.rel (%p238) target = $region48
        $region47: #{tpu_custom_call.1} parent=39 // pred_region
          %241 = dma.done [#allocation6], 96
        $region48: #{tpu_custom_call.1} parent=39 // pred_fallthru
          _
        // Predicated region
        $region49: #{tpu_custom_call.1} parent=39 // pred_check
          %p242 = pneg %p107
        $region50: #{tpu_custom_call.1} parent=39 // pred_check_branch
          %244 = sbr.rel (%p242) target = $region52
        $region51: #{tpu_custom_call.1} parent=39 // pred_region
          %245 = dma.done [#allocation6], 6144
        $region52: #{tpu_custom_call.1} parent=39 // pred_fallthru
          _
        %s246 = sand.u32 %s31, 1
        %s247 = scalar_lea.sflag [#allocation3], %s246
        %s248 = sand.u32 %s31, 1
        %s249 = smul.addr %s248, 48
        %s250 = scalar_lea.vmem [#allocation2], %s249
        %p251 = pneg %p44
        %p252 = pneg %p41
        %p253 = pneg %p65
        %p254 = pneg %p62
        %p255 = pneg %p86
        %p256 = pneg %p83
        %p257 = pneg %p107
        %p258 = pneg %p104
        %p259 = pneg %p128
        %p260 = pneg %p125
        %p261 = pneg %p154
        %p262 = pneg %p151
        %s263 = sand.u32 %s141, 1
        %s264 = scalar_lea.sflag [#allocation4], %s263
        %s265 = sand.u32 %s141, 1
        %s266 = smul.addr %s265, 8
        %s267 = scalar_lea.vmem [#allocation8], %s266
        %v269 = vld [vmem:[%s233] sm:$0xff]
        %v270 = vld [vmem:[%s233 + $0x8] sm:$0xff]
        %v271 = vld [vmem:[%s233 + $0x10] sm:$0xff]
        %v272 = vld [vmem:[%s233 + $0x18] sm:$0xff]
        %v273 = vld [vmem:[%s233 + $0x20] sm:$0xff]
        %v274 = vld [vmem:[%s233 + $0x28] sm:$0xff]
        %v275 = vld [vmem:[#allocation5] sm:$0x3f]
        %v277 = vlaneseq
        %v278 = vshrl.u32 %v277, 7
        %v279 = vsub.s32 0, %v278
        %v280 = vrot.slane %v275, %v279
        %v281 = vlaneseq
        %v282 = vshrl.u32 %v281, 7
        %v283 = vsub.s32 1, %v282
        %v284 = vrot.slane %v275, %v283
        %v285 = vlaneseq
        %v286 = vshrl.u32 %v285, 7
        %v287 = vsub.s32 2, %v286
        %v288 = vrot.slane %v275, %v287
        %v289 = vlaneseq
        %v290 = vshrl.u32 %v289, 7
        %v291 = vsub.s32 3, %v290
        %v292 = vrot.slane %v275, %v291
        %v293 = vlaneseq
        %v294 = vshrl.u32 %v293, 7
        %v295 = vsub.s32 4, %v294
        %v296 = vrot.slane %v275, %v295
        %v297 = vlaneseq
        %v298 = vshrl.u32 %v297, 7
        %v299 = vsub.s32 5, %v298
        %v300 = vrot.slane %v275, %v299
        %v307 = vsub.f32 %v269, %v280
        %v308 = vsub.f32 %v270, %v284
        %v309 = vsub.f32 %v271, %v288
        %v310 = vsub.f32 %v272, %v292
        %v311 = vsub.f32 %v273, %v296
        %v312 = vsub.f32 %v274, %v300
        %v313 = vld [vmem:[%s2] sm:$0x3f]
        %v315 = vlaneseq
        %v316 = vshrl.u32 %v315, 7
        %v317 = vsub.s32 0, %v316
        %v318 = vrot.slane %v313, %v317
        %v319 = vlaneseq
        %v320 = vshrl.u32 %v319, 7
        %v321 = vsub.s32 1, %v320
        %v322 = vrot.slane %v313, %v321
        %v323 = vlaneseq
        %v324 = vshrl.u32 %v323, 7
        %v325 = vsub.s32 2, %v324
        %v326 = vrot.slane %v313, %v325
        %v327 = vlaneseq
        %v328 = vshrl.u32 %v327, 7
        %v329 = vsub.s32 3, %v328
        %v330 = vrot.slane %v313, %v329
        %v331 = vlaneseq
        %v332 = vshrl.u32 %v331, 7
        %v333 = vsub.s32 4, %v332
        %v334 = vrot.slane %v313, %v333
        %v335 = vlaneseq
        %v336 = vshrl.u32 %v335, 7
        %v337 = vsub.s32 5, %v336
        %v338 = vrot.slane %v313, %v337
        %v345 = vmul.f32 %v307, %v318
        %v346 = vmul.f32 %v308, %v322
        %v347 = vmul.f32 %v309, %v326
        %v348 = vmul.f32 %v310, %v330
        %v349 = vmul.f32 %v311, %v334
        %v350 = vmul.f32 %v312, %v338
        %v351 = vpack.c.bf16 %v345, %v345
        %v352 = vpack.c.bf16 %v346, %v346
        %v353 = vpack.c.bf16 %v347, %v347
        %v354 = vpack.c.bf16 %v348, %v348
        %v355 = vpack.c.bf16 %v349, %v349
        %v356 = vpack.c.bf16 %v350, %v350
        %v357 = vld [vmem:[#allocation7] sm:$0xf]
        %v358 = vld [vmem:[#allocation7 + $0x4] sm:$0xf]
        %v359 = vld [vmem:[#allocation7 + $0x8] sm:$0xf]
        %v360 = vld [vmem:[#allocation7 + $0xc] sm:$0xf]
        %v361 = vld [vmem:[#allocation7 + $0x10] sm:$0xf]
        %v362 = vld [vmem:[#allocation7 + $0x14] sm:$0xf]
        %v363 = vld [vmem:[#allocation7 + $0x18] sm:$0xf]
        %v364 = vld [vmem:[#allocation7 + $0x1c] sm:$0xf]
        %v365 = vld [vmem:[#allocation7 + $0x20] sm:$0xf]
        %v366 = vld [vmem:[#allocation7 + $0x24] sm:$0xf]
        %v367 = vld [vmem:[#allocation7 + $0x28] sm:$0xf]
        %v368 = vld [vmem:[#allocation7 + $0x2c] sm:$0xf]
        %v369 = vld [vmem:[#allocation7 + $0x30] sm:$0xf]
        %v370 = vld [vmem:[#allocation7 + $0x34] sm:$0xf]
        %v371 = vld [vmem:[#allocation7 + $0x38] sm:$0xf]
        %v372 = vld [vmem:[#allocation7 + $0x3c] sm:$0xf]
        %v373 = vld [vmem:[#allocation7 + $0x40] sm:$0xf]
        %v374 = vld [vmem:[#allocation7 + $0x44] sm:$0xf]
        %v375 = vld [vmem:[#allocation7 + $0x48] sm:$0xf]
        %v376 = vld [vmem:[#allocation7 + $0x4c] sm:$0xf]
        %v377 = vld [vmem:[#allocation7 + $0x50] sm:$0xf]
        %v378 = vld [vmem:[#allocation7 + $0x54] sm:$0xf]
        %v379 = vld [vmem:[#allocation7 + $0x58] sm:$0xf]
        %v380 = vld [vmem:[#allocation7 + $0x5c] sm:$0xf]
        %v381 = vld [vmem:[#allocation7 + $0x60] sm:$0xf]
        %v382 = vld [vmem:[#allocation7 + $0x64] sm:$0xf]
        %v383 = vld [vmem:[#allocation7 + $0x68] sm:$0xf]
        %v384 = vld [vmem:[#allocation7 + $0x6c] sm:$0xf]
        %v385 = vld [vmem:[#allocation7 + $0x70] sm:$0xf]
        %v386 = vld [vmem:[#allocation7 + $0x74] sm:$0xf]
        %v387 = vld [vmem:[#allocation7 + $0x78] sm:$0xf]
        %v388 = vld [vmem:[#allocation7 + $0x7c] sm:$0xf]
        %v389 = vld [vmem:[#allocation7 + $0x80] sm:$0xf]
        %v390 = vld [vmem:[#allocation7 + $0x84] sm:$0xf]
        %v391 = vld [vmem:[#allocation7 + $0x88] sm:$0xf]
        %v392 = vld [vmem:[#allocation7 + $0x8c] sm:$0xf]
        %v393 = vld [vmem:[#allocation7 + $0x90] sm:$0xf]
        %v394 = vld [vmem:[#allocation7 + $0x94] sm:$0xf]
        %v395 = vld [vmem:[#allocation7 + $0x98] sm:$0xf]
        %v396 = vld [vmem:[#allocation7 + $0x9c] sm:$0xf]
        %v397 = vld [vmem:[#allocation7 + $0xa0] sm:$0xf]
        %v398 = vld [vmem:[#allocation7 + $0xa4] sm:$0xf]
        %v399 = vld [vmem:[#allocation7 + $0xa8] sm:$0xf]
        %v400 = vld [vmem:[#allocation7 + $0xac] sm:$0xf]
        %v401 = vld [vmem:[#allocation7 + $0xb0] sm:$0xf]
        %v402 = vld [vmem:[#allocation7 + $0xb4] sm:$0xf]
        %v403 = vld [vmem:[#allocation7 + $0xb8] sm:$0xf]
        %v404 = vld [vmem:[#allocation7 + $0xbc] sm:$0xf]
        %v405 = vld [vmem:[#allocation7 + $0xc0] sm:$0xf]
        %v406 = vld [vmem:[#allocation7 + $0xc4] sm:$0xf]
        %v407 = vld [vmem:[#allocation7 + $0xc8] sm:$0xf]
        %v408 = vld [vmem:[#allocation7 + $0xcc] sm:$0xf]
        %v409 = vld [vmem:[#allocation7 + $0xd0] sm:$0xf]
        %v410 = vld [vmem:[#allocation7 + $0xd4] sm:$0xf]
        %v411 = vld [vmem:[#allocation7 + $0xd8] sm:$0xf]
        %v412 = vld [vmem:[#allocation7 + $0xdc] sm:$0xf]
        %v413 = vld [vmem:[#allocation7 + $0xe0] sm:$0xf]
        %v414 = vld [vmem:[#allocation7 + $0xe4] sm:$0xf]
        %v415 = vld [vmem:[#allocation7 + $0xe8] sm:$0xf]
        %v416 = vld [vmem:[#allocation7 + $0xec] sm:$0xf]
        %v417 = vld [vmem:[#allocation7 + $0xf0] sm:$0xf]
        %v418 = vld [vmem:[#allocation7 + $0xf4] sm:$0xf]
        %v419 = vld [vmem:[#allocation7 + $0xf8] sm:$0xf]
        %v420 = vld [vmem:[#allocation7 + $0xfc] sm:$0xf]
        %v421 = vld [vmem:[#allocation7 + $0x100] sm:$0xf]
        %v422 = vld [vmem:[#allocation7 + $0x104] sm:$0xf]
        %v423 = vld [vmem:[#allocation7 + $0x108] sm:$0xf]
        %v424 = vld [vmem:[#allocation7 + $0x10c] sm:$0xf]
        %v425 = vld [vmem:[#allocation7 + $0x110] sm:$0xf]
        %v426 = vld [vmem:[#allocation7 + $0x114] sm:$0xf]
        %v427 = vld [vmem:[#allocation7 + $0x118] sm:$0xf]
        %v428 = vld [vmem:[#allocation7 + $0x11c] sm:$0xf]
        %v429 = vld [vmem:[#allocation7 + $0x120] sm:$0xf]
        %v430 = vld [vmem:[#allocation7 + $0x124] sm:$0xf]
        %v431 = vld [vmem:[#allocation7 + $0x128] sm:$0xf]
        %v432 = vld [vmem:[#allocation7 + $0x12c] sm:$0xf]
        %v433 = vld [vmem:[#allocation7 + $0x130] sm:$0xf]
        %v434 = vld [vmem:[#allocation7 + $0x134] sm:$0xf]
        %v435 = vld [vmem:[#allocation7 + $0x138] sm:$0xf]
        %v436 = vld [vmem:[#allocation7 + $0x13c] sm:$0xf]
        %v437 = vld [vmem:[#allocation7 + $0x140] sm:$0xf]
        %v438 = vld [vmem:[#allocation7 + $0x144] sm:$0xf]
        %v439 = vld [vmem:[#allocation7 + $0x148] sm:$0xf]
        %v440 = vld [vmem:[#allocation7 + $0x14c] sm:$0xf]
        %v441 = vld [vmem:[#allocation7 + $0x150] sm:$0xf]
        %v442 = vld [vmem:[#allocation7 + $0x154] sm:$0xf]
        %v443 = vld [vmem:[#allocation7 + $0x158] sm:$0xf]
        %v444 = vld [vmem:[#allocation7 + $0x15c] sm:$0xf]
        %v445 = vld [vmem:[#allocation7 + $0x160] sm:$0xf]
        %v446 = vld [vmem:[#allocation7 + $0x164] sm:$0xf]
        %v447 = vld [vmem:[#allocation7 + $0x168] sm:$0xf]
        %v448 = vld [vmem:[#allocation7 + $0x16c] sm:$0xf]
        %v449 = vld [vmem:[#allocation7 + $0x170] sm:$0xf]
        %v450 = vld [vmem:[#allocation7 + $0x174] sm:$0xf]
        %v451 = vld [vmem:[#allocation7 + $0x178] sm:$0xf]
        %v452 = vld [vmem:[#allocation7 + $0x17c] sm:$0xf]
        %v453 = vld [vmem:[%s4] sm:$0x1]
        %v455 = vlaneseq
        %v456 = vshrl.u32 %v455, 7
        %v457 = vsub.s32 0, %v456
        %v458 = vrot.slane %v453, %v457
        %v556 = vunpack.c.l.b16 %v357
        %v557 = vunpack.c.l.b16 %v358
        %v558 = vunpack.c.l.b16 %v359
        %v559 = vunpack.c.l.b16 %v360
        %v560 = vunpack.c.l.b16 %v361
        %v561 = vunpack.c.l.b16 %v362
        %v562 = vunpack.c.l.b16 %v363
        %v563 = vunpack.c.l.b16 %v364
        %v564 = vunpack.c.l.b16 %v365
        %v565 = vunpack.c.l.b16 %v366
        %v566 = vunpack.c.l.b16 %v367
        %v567 = vunpack.c.l.b16 %v368
        %v568 = vunpack.c.l.b16 %v369
        %v569 = vunpack.c.l.b16 %v370
        %v570 = vunpack.c.l.b16 %v371
        %v571 = vunpack.c.l.b16 %v372
        %v572 = vunpack.c.l.b16 %v373
        %v573 = vunpack.c.l.b16 %v374
        %v574 = vunpack.c.l.b16 %v375
        %v575 = vunpack.c.l.b16 %v376
        %v576 = vunpack.c.l.b16 %v377
        %v577 = vunpack.c.l.b16 %v378
        %v578 = vunpack.c.l.b16 %v379
        %v579 = vunpack.c.l.b16 %v380
        %v580 = vunpack.c.l.b16 %v381
        %v581 = vunpack.c.l.b16 %v382
        %v582 = vunpack.c.l.b16 %v383
        %v583 = vunpack.c.l.b16 %v384
        %v584 = vunpack.c.l.b16 %v385
        %v585 = vunpack.c.l.b16 %v386
        %v586 = vunpack.c.l.b16 %v387
        %v587 = vunpack.c.l.b16 %v388
        %v588 = vunpack.c.l.b16 %v389
        %v589 = vunpack.c.l.b16 %v390
        %v590 = vunpack.c.l.b16 %v391
        %v591 = vunpack.c.l.b16 %v392
        %v592 = vunpack.c.l.b16 %v393
        %v593 = vunpack.c.l.b16 %v394
        %v594 = vunpack.c.l.b16 %v395
        %v595 = vunpack.c.l.b16 %v396
        %v596 = vunpack.c.l.b16 %v397
        %v597 = vunpack.c.l.b16 %v398
        %v598 = vunpack.c.l.b16 %v399
        %v599 = vunpack.c.l.b16 %v400
        %v600 = vunpack.c.l.b16 %v401
        %v601 = vunpack.c.l.b16 %v402
        %v602 = vunpack.c.l.b16 %v403
        %v603 = vunpack.c.l.b16 %v404
        %v604 = vunpack.c.l.b16 %v405
        %v605 = vunpack.c.l.b16 %v406
        %v606 = vunpack.c.l.b16 %v407
        %v607 = vunpack.c.l.b16 %v408
        %v608 = vunpack.c.l.b16 %v409
        %v609 = vunpack.c.l.b16 %v410
        %v610 = vunpack.c.l.b16 %v411
        %v611 = vunpack.c.l.b16 %v412
        %v612 = vunpack.c.l.b16 %v413
        %v613 = vunpack.c.l.b16 %v414
        %v614 = vunpack.c.l.b16 %v415
        %v615 = vunpack.c.l.b16 %v416
        %v616 = vunpack.c.l.b16 %v417
        %v617 = vunpack.c.l.b16 %v418
        %v618 = vunpack.c.l.b16 %v419
        %v619 = vunpack.c.l.b16 %v420
        %v620 = vunpack.c.l.b16 %v421
        %v621 = vunpack.c.l.b16 %v422
        %v622 = vunpack.c.l.b16 %v423
        %v623 = vunpack.c.l.b16 %v424
        %v624 = vunpack.c.l.b16 %v425
        %v625 = vunpack.c.l.b16 %v426
        %v626 = vunpack.c.l.b16 %v427
        %v627 = vunpack.c.l.b16 %v428
        %v628 = vunpack.c.l.b16 %v429
        %v629 = vunpack.c.l.b16 %v430
        %v630 = vunpack.c.l.b16 %v431
        %v631 = vunpack.c.l.b16 %v432
        %v632 = vunpack.c.l.b16 %v433
        %v633 = vunpack.c.l.b16 %v434
        %v634 = vunpack.c.l.b16 %v435
        %v635 = vunpack.c.l.b16 %v436
        %v636 = vunpack.c.l.b16 %v437
        %v637 = vunpack.c.l.b16 %v438
        %v638 = vunpack.c.l.b16 %v439
        %v639 = vunpack.c.l.b16 %v440
        %v640 = vunpack.c.l.b16 %v441
        %v641 = vunpack.c.l.b16 %v442
        %v642 = vunpack.c.l.b16 %v443
        %v643 = vunpack.c.l.b16 %v444
        %v644 = vunpack.c.l.b16 %v445
        %v645 = vunpack.c.l.b16 %v446
        %v646 = vunpack.c.l.b16 %v447
        %v647 = vunpack.c.l.b16 %v448
        %v648 = vunpack.c.l.b16 %v449
        %v649 = vunpack.c.l.b16 %v450
        %v650 = vunpack.c.l.b16 %v451
        %v651 = vunpack.c.l.b16 %v452
        %v652 = vpack.c.b16 %v557, %v556
        %v653 = vpack.c.b16 %v559, %v558
        %v654 = vpack.c.b16 %v561, %v560
        %v655 = vpack.c.b16 %v563, %v562
        %v656 = vpack.c.b16 %v565, %v564
        %v657 = vpack.c.b16 %v567, %v566
        %v658 = vpack.c.b16 %v569, %v568
        %v659 = vpack.c.b16 %v571, %v570
        %v660 = vpack.c.b16 %v573, %v572
        %v661 = vpack.c.b16 %v575, %v574
        %v662 = vpack.c.b16 %v577, %v576
        %v663 = vpack.c.b16 %v579, %v578
        %v664 = vpack.c.b16 %v581, %v580
        %v665 = vpack.c.b16 %v583, %v582
        %v666 = vpack.c.b16 %v585, %v584
        %v667 = vpack.c.b16 %v587, %v586
        %v668 = vpack.c.b16 %v589, %v588
        %v669 = vpack.c.b16 %v591, %v590
        %v670 = vpack.c.b16 %v593, %v592
        %v671 = vpack.c.b16 %v595, %v594
        %v672 = vpack.c.b16 %v597, %v596
        %v673 = vpack.c.b16 %v599, %v598
        %v674 = vpack.c.b16 %v601, %v600
        %v675 = vpack.c.b16 %v603, %v602
        %v676 = vpack.c.b16 %v605, %v604
        %v677 = vpack.c.b16 %v607, %v606
        %v678 = vpack.c.b16 %v609, %v608
        %v679 = vpack.c.b16 %v611, %v610
        %v680 = vpack.c.b16 %v613, %v612
        %v681 = vpack.c.b16 %v615, %v614
        %v682 = vpack.c.b16 %v617, %v616
        %v683 = vpack.c.b16 %v619, %v618
        %v684 = vpack.c.b16 %v621, %v620
        %v685 = vpack.c.b16 %v623, %v622
        %v686 = vpack.c.b16 %v625, %v624
        %v687 = vpack.c.b16 %v627, %v626
        %v688 = vpack.c.b16 %v629, %v628
        %v689 = vpack.c.b16 %v631, %v630
        %v690 = vpack.c.b16 %v633, %v632
        %v691 = vpack.c.b16 %v635, %v634
        %v692 = vpack.c.b16 %v637, %v636
        %v693 = vpack.c.b16 %v639, %v638
        %v694 = vpack.c.b16 %v641, %v640
        %v695 = vpack.c.b16 %v643, %v642
        %v696 = vpack.c.b16 %v645, %v644
        %v697 = vpack.c.b16 %v647, %v646
        %v698 = vpack.c.b16 %v649, %v648
        %v699 = vpack.c.b16 %v651, %v650
        %748 = vmatprep.subr.bf16.mxu0 0
        %749 = vmatpush1.bf16.msra.mxu0 %v652
        %750 = vmatprep.subr.bf16.mxu0 0
        %751 = vmatpush1.bf16.msra.mxu0 %v653
        %752 = vmatprep.subr.bf16.mxu0 0
        %753 = vmatpush1.bf16.msra.mxu0 %v654
        %754 = vmatprep.subr.bf16.mxu0 0
        %755 = vmatpush1.bf16.msra.mxu0 %v655
        %756 = vmatprep.subr.bf16.mxu0 0
        %757 = vmatpush1.bf16.msra.mxu0 %v656
        %758 = vmatprep.subr.bf16.mxu0 0
        %759 = vmatpush1.bf16.msra.mxu0 %v657
        %760 = vmatprep.subr.bf16.mxu0 0
        %761 = vmatpush1.bf16.msra.mxu0 %v658
        %762 = vmatprep.subr.bf16.mxu0 0
        %763 = vmatpush1.bf16.msra.mxu0 %v659
        %764 = vmatprep.subr.bf16.mxu0 0
        %765 = vmatpush1.bf16.msra.mxu0 %v660
        %766 = vmatprep.subr.bf16.mxu0 0
        %767 = vmatpush1.bf16.msra.mxu0 %v661
        %768 = vmatprep.subr.bf16.mxu0 0
        %769 = vmatpush1.bf16.msra.mxu0 %v662
        %770 = vmatprep.subr.bf16.mxu0 0
        %771 = vmatpush1.bf16.msra.mxu0 %v663
        %772 = vmatprep.subr.bf16.mxu0 0
        %773 = vmatpush1.bf16.msra.mxu0 %v664
        %774 = vmatprep.subr.bf16.mxu0 0
        %775 = vmatpush1.bf16.msra.mxu0 %v665
        %776 = vmatprep.subr.bf16.mxu0 0
        %777 = vmatpush1.bf16.msra.mxu0 %v666
        %778 = vmatprep.subr.bf16.mxu0 0
        %779 = vmatpush1.bf16.msra.mxu0 %v667
        %780 = vmatprep.mubr.bf16.mxu0 %v352
        %781 = vmatmul.mubr.bf16.gmra.mrb[0].mxu0 %v351
        %v782 = vpop.f32.mrb[0].mxu0
        %v783 = vadd.f32 %v458, %v782
        %v784 = vpop.f32.mrb[0].mxu0
        %v785 = vpop.f32.mrb[0].mxu0
        %v786 = vpop.f32.mrb[0].mxu0
        %787 = vdwg.mxu0
        %788 = vmatprep.subr.bf16.mxu0 0
        %789 = vmatpush1.bf16.msra.mxu0 %v668
        %790 = vmatprep.subr.bf16.mxu0 0
        %791 = vmatpush1.bf16.msra.mxu0 %v669
        %792 = vmatprep.subr.bf16.mxu0 0
        %793 = vmatpush1.bf16.msra.mxu0 %v670
        %794 = vmatprep.subr.bf16.mxu0 0
        %795 = vmatpush1.bf16.msra.mxu0 %v671
        %796 = vmatprep.subr.bf16.mxu0 0
        %797 = vmatpush1.bf16.msra.mxu0 %v672
        %798 = vmatprep.subr.bf16.mxu0 0
        %799 = vmatpush1.bf16.msra.mxu0 %v673
        %800 = vmatprep.subr.bf16.mxu0 0
        %801 = vmatpush1.bf16.msra.mxu0 %v674
        %802 = vmatprep.subr.bf16.mxu0 0
        %803 = vmatpush1.bf16.msra.mxu0 %v675
        %804 = vmatprep.subr.bf16.mxu0 0
        %805 = vmatpush1.bf16.msra.mxu0 %v676
        %806 = vmatprep.subr.bf16.mxu0 0
        %807 = vmatpush1.bf16.msra.mxu0 %v677
        %808 = vmatprep.subr.bf16.mxu0 0
        %809 = vmatpush1.bf16.msra.mxu0 %v678
        %810 = vmatprep.subr.bf16.mxu0 0
        %811 = vmatpush1.bf16.msra.mxu0 %v679
        %812 = vmatprep.subr.bf16.mxu0 0
        %813 = vmatpush1.bf16.msra.mxu0 %v680
        %814 = vmatprep.subr.bf16.mxu0 0
        %815 = vmatpush1.bf16.msra.mxu0 %v681
        %816 = vmatprep.subr.bf16.mxu0 0
        %817 = vmatpush1.bf16.msra.mxu0 %v682
        %818 = vmatprep.subr.bf16.mxu0 0
        %819 = vmatpush1.bf16.msra.mxu0 %v683
        %820 = vmatprep.mubr.bf16.mxu0 %v354
        %821 = vmatmul.mubr.bf16.gmra.mrb[0].mxu0 %v353
        %v822 = vpop.f32.mrb[0].mxu0
        %v823 = vadd.f32 %v783, %v822
        %v824 = vpop.f32.mrb[0].mxu0
        %v825 = vpop.f32.mrb[0].mxu0
        %v826 = vpop.f32.mrb[0].mxu0
        %827 = vdwg.mxu0
        %828 = vmatprep.subr.bf16.mxu0 0
        %829 = vmatpush1.bf16.msra.mxu0 %v684
        %830 = vmatprep.subr.bf16.mxu0 0
        %831 = vmatpush1.bf16.msra.mxu0 %v685
        %832 = vmatprep.subr.bf16.mxu0 0
        %833 = vmatpush1.bf16.msra.mxu0 %v686
        %834 = vmatprep.subr.bf16.mxu0 0
        %835 = vmatpush1.bf16.msra.mxu0 %v687
        %836 = vmatprep.subr.bf16.mxu0 0
        %837 = vmatpush1.bf16.msra.mxu0 %v688
        %838 = vmatprep.subr.bf16.mxu0 0
        %839 = vmatpush1.bf16.msra.mxu0 %v689
        %840 = vmatprep.subr.bf16.mxu0 0
        %841 = vmatpush1.bf16.msra.mxu0 %v690
        %842 = vmatprep.subr.bf16.mxu0 0
        %843 = vmatpush1.bf16.msra.mxu0 %v691
        %844 = vmatprep.subr.bf16.mxu0 0
        %845 = vmatpush1.bf16.msra.mxu0 %v692
        %846 = vmatprep.subr.bf16.mxu0 0
        %847 = vmatpush1.bf16.msra.mxu0 %v693
        %848 = vmatprep.subr.bf16.mxu0 0
        %849 = vmatpush1.bf16.msra.mxu0 %v694
        %850 = vmatprep.subr.bf16.mxu0 0
        %851 = vmatpush1.bf16.msra.mxu0 %v695
        %852 = vmatprep.subr.bf16.mxu0 0
        %853 = vmatpush1.bf16.msra.mxu0 %v696
        %854 = vmatprep.subr.bf16.mxu0 0
        %855 = vmatpush1.bf16.msra.mxu0 %v697
        %856 = vmatprep.subr.bf16.mxu0 0
        %857 = vmatpush1.bf16.msra.mxu0 %v698
        %858 = vmatprep.subr.bf16.mxu0 0
        %859 = vmatpush1.bf16.msra.mxu0 %v699
        %860 = vmatprep.mubr.bf16.mxu0 %v356
        %861 = vmatmul.mubr.bf16.gmra.mrb[0].mxu0 %v355
        %v862 = vpop.f32.mrb[0].mxu0
        %v863 = vadd.f32 %v823, %v862
        %v864 = vpop.f32.mrb[0].mxu0
        %v865 = vpop.f32.mrb[0].mxu0
        %v866 = vpop.f32.mrb[0].mxu0
        %867 = vdwg.mxu0
        %868 = vst [vmem:[%s267] sm:$0xff] %v863
        %s869 = sand.u32 %s141, 1
        %s870 = scalar_lea.sflag [#allocation4], %s869
        %s871 = sand.u32 %s141, 1
        %s872 = smul.addr %s871, 8
        %s873 = scalar_lea.vmem [#allocation8], %s872
        // Predicated region
        $region53: #{tpu_custom_call.1} parent=39 // pred_check
          %p874 = pneg %p151
        $region54: #{tpu_custom_call.1} parent=39 // pred_check_branch
          %876 = sbr.rel (%p874) target = $region56
        $region55: #{tpu_custom_call.1} parent=39 // pred_region
          %s878 = ssub.s32 128, 128
          %879 = vsyncadd %s870, %s878
          %s880 = smul.addr %s23, 128
          %s881 = scalar_lea.hbm %s5, %s880
          %s883 = sshll.u32 %s873, 4
          %s884 = int_to_ptr.vmem [resolvable:$true] %s883
          %886 = dma.vmem_to_hbm [thread:$0]  %s884, 128, %s881, %s870
        $region56: #{tpu_custom_call.1} parent=39 // pred_fallthru
          _
      $region40: #{tpu_custom_call.1} parent=5 // pred_fallthru
        _
      %p887 = scmp.le.s32.totalorder 2, %s18
      // Predicated region
      $region57: #{tpu_custom_call.1} parent=5 // pred_check
        %p888 = pneg %p887
      $region58: #{tpu_custom_call.1} parent=5 // pred_check_branch
        %890 = sbr.rel (%p888) target = $region60
      $region59: #{tpu_custom_call.1} parent=5 // pred_region
        %s891 = ssub.s32 %s18, 2
        // Predicated region
        $region61: #{tpu_custom_call.1} parent=59 // pred_check
          %p892 = pneg %p157
        $region62: #{tpu_custom_call.1} parent=59 // pred_check_branch
          %894 = sbr.rel (%p892) target = $region64
        $region63: #{tpu_custom_call.1} parent=59 // pred_region
          %s895 = sand.u32 %s142, 1
          %s896 = scalar_lea.sflag [#allocation4], %s895
          %s897 = sand.u32 %s142, 1
          %s898 = smul.addr %s897, 8
          %s899 = scalar_lea.vmem [#allocation8], %s898
          %900 = dma.done %s896, 128
        $region64: #{tpu_custom_call.1} parent=59 // pred_fallthru
          _
      $region60: #{tpu_custom_call.1} parent=5 // pred_fallthru
        _
    $region6: #{tpu_custom_call.1} parent=1 // loop_footer
      %s22 = sadd.s32 1, %s18
    $region7: #{tpu_custom_call.1} parent=1 // loop_footer_branch
      %17 = sbr.rel target = $region3
    $region8: #{tpu_custom_call.1} parent=1 // loop_exit
      _
    %901 = vsyncpa [#allocation3], 1
    %s902 = scalar_lea.sflag [#allocation3], 1
    %903 = vsyncpa %s902, 1
    %904 = vsyncpa [#allocation6], 1
    %905 = vsyncpa [#allocation4], 1
    %s906 = scalar_lea.sflag [#allocation4], 1
    %907 = vsyncpa %s906, 1

</llo_original>
